<compile_context>
chip_gen: v6e
topology: v6e:2x2x1
jax: 0.10.0
libtpu: 0.0.40
codegen_flags: <defaults>
</compile_context>

<pallas_src>
import math

import jax
import jax.numpy as jnp
from jax.experimental import pallas as pl
from jax.experimental.pallas import tpu as pltpu


def _round_up(x, m):
    return ((x + m - 1) // m) * m


# ----------------------------------------------------------------------------
# Fused forward kernel, single invocation (grid = ()):
#   out1 = relu( sum_r A_r @ V1_r + B1 )            (bf16 MXU feeds, f32 acc)
#   out  = relu( sum_r (A_r @ out1) @ V2_r + B2 )
# All operands live wholly in VMEM; accumulators stay in vregs — no scratch,
# no per-relation grid steps, no dead DMA of the unused layer's weights.
# ----------------------------------------------------------------------------
def _fused_rgcn_kernel(a_ref, v1_ref, v2_ref, b1_ref, b2_ref, o_ref):
    R = a_ref.shape[0]

    # ---- gc1 (featureless) -------------------------------------------------
    # Static Python loop == fully unrolled at trace time (R is tiny & static);
    # start from the r=0 product so there is no zero-fill + read-modify-write.
    out1 = jnp.dot(a_ref[0], v1_ref[0], preferred_element_type=jnp.float32)
    for r in range(1, R):
        out1 = out1 + jnp.dot(a_ref[r], v1_ref[r],
                              preferred_element_type=jnp.float32)
    out1 = jnp.maximum(out1 + b1_ref[...], 0.0)      # f32 epilogue (v5e VPU safe)
    out1_b = out1.astype(jnp.bfloat16)               # bf16 feed for the MXU

    # ---- gc2 (features = out1) ---------------------------------------------
    def rel_term(r):
        t = jnp.dot(a_ref[r], out1_b, preferred_element_type=jnp.float32)
        return jnp.dot(t.astype(jnp.bfloat16), v2_ref[r],
                       preferred_element_type=jnp.float32)

    acc = rel_term(0)
    for r in range(1, R):
        acc = acc + rel_term(r)
    o_ref[...] = jnp.maximum(acc + b2_ref[...], 0.0)


# ----------------------------------------------------------------------------
# Parameter setup (mirrors RGCLayer.__init__ / reset_parameters)
# ----------------------------------------------------------------------------
def xavier_uniform(key, shape):
    # torch nn.init.xavier_uniform_ for 2-D: fan_in = size(1), fan_out = size(0)
    fan_out, fan_in = shape
    bound = math.sqrt(6.0 / (fan_in + fan_out))
    return jax.random.uniform(key, shape, jnp.float32, -bound, bound)


def make_rgc_layer_params(key, input_dim, h_dim, num_rels, num_base):
    k1, k2 = jax.random.split(key)
    W = xavier_uniform(k1, (input_dim * num_base, h_dim))
    W_comp = xavier_uniform(k2, (num_rels, num_base))
    B = jnp.zeros((h_dim,), jnp.float32)
    return dict(W=W, W_comp=W_comp, B=B,
                input_dim=input_dim, h_dim=h_dim,
                num_rels=num_rels, num_base=num_base)


def basis_combine(params):
    """V = reshape(W_comp @ reshape(W,(nb,in,h)).permute(1,0,2), (in*R, h))."""
    W, W_comp = params["W"], params["W_comp"]
    nb, in_dim, h = params["num_base"], params["input_dim"], params["h_dim"]
    W3 = W.reshape(nb, in_dim, h).transpose(1, 0, 2)        # (in, nb, h)
    V = jnp.einsum("pb,dbh->dph", W_comp, W3)               # (in, R, h)
    return V.reshape(in_dim * params["num_rels"], h)


# ----------------------------------------------------------------------------
# Fused RGCN forward (dropout prob = 0.0 -> dropout is the identity)
# ----------------------------------------------------------------------------
# TODO(synk): F.dropout (training semantics in the reference) is modeled as
# identity since drop_prob=0.0; the stochastic path is not modeled.
def rgcn_forward(vertex, A_stack, gc1, gc2):
    """Fused RGCN forward.  `vertex` is intentionally unused: gc1 is
    featureless, exactly matching the PyTorch module (kept for signature
    parity)."""
    del vertex

    R, N, _ = A_stack.shape
    H = gc1["h_dim"]
    assert gc1["input_dim"] == N, "featureless gc1 requires input_dim == num_nodes"
    assert gc2["input_dim"] == H and gc2["h_dim"] == H

    # Output/lane dim padded to a full 128-lane width -> unmasked vst on the
    # final store.  Contraction (K) dims are NOT padded (padding V2's K dim
    # was 16x wasted MXU work / HBM traffic at H=32).
    HP = _round_up(max(H, 128), 128)

    # PyTorch flat ordering: supports-concat column c pairs with V row c, and
    # the per-relation block of V is rows [r*in,(r+1)*in) == V.reshape(R,in,H)[r].
    V1 = basis_combine(gc1).reshape(R, N, H)
    V2 = basis_combine(gc2).reshape(R, H, H)
    V2p = jnp.pad(V2, ((0, 0), (0, 0), (0, HP - H)))        # pad output dim only

    # bf16 MXU feeds (native 2x256^2 bf16 on v6e/v7x, 4x128^2 on v5e);
    # accumulation and the bias/relu epilogues remain f32.
    A_b = A_stack.astype(jnp.bfloat16)
    V1_b = V1.astype(jnp.bfloat16)
    V2_b = V2p.astype(jnp.bfloat16)
    B1 = gc1["B"].reshape(1, H).astype(jnp.float32)
    B2 = jnp.pad(gc2["B"], (0, HP - H)).reshape(1, HP).astype(jnp.float32)

    # Generation-aware VMEM budget (v7x: 64 MiB/TC, v5e/v6e: 128 MiB).
    try:
        vmem_cap = int(getattr(pltpu.get_tpu_info(), "vmem_capacity_bytes",
                               64 * 1024 * 1024))
    except Exception:        # non-TPU / interpret-mode fallback
        vmem_cap = 64 * 1024 * 1024
    vmem_budget = int(0.75 * vmem_cap)

    resident_bytes = (
        (A_b.size + V1_b.size + V2_b.size) * 2       # bf16 inputs
        + (B1.size + B2.size + N * HP) * 4           # f32 biases + output block
        + 3 * N * HP * 4                             # f32 accumulators/intermediates
    )
    # TODO(synk): for production-scale N, switch to a tiled pipeline — M rows
    # on a leading 'parallel' grid axis, K(=N)/relation on trailing 'arbitrary'
    # axes with pl.Buffered(3) on the A stream — and on v7x either split into
    # two pallas_calls (M parallel across both TensorCores) or hold out1 in
    # pltpu.VMEM_SHARED.
    assert resident_bytes < vmem_budget, (
        "operands do not fit the single-invocation VMEM path; add M/K tiling")

    out = pl.pallas_call(
        _fused_rgcn_kernel,
        out_shape=jax.ShapeDtypeStruct((N, HP), jnp.float32),
        in_specs=[pl.BlockSpec(memory_space=pltpu.MemorySpace.VMEM)] * 5,
        out_specs=pl.BlockSpec(memory_space=pltpu.MemorySpace.VMEM),
        compiler_params=pltpu.CompilerParams(
            vmem_limit_bytes=min(vmem_budget, 64 * 1024 * 1024)),
    )(A_b, V1_b, V2_b, B1, B2)

    return out[:, :H]


# ----------------------------------------------------------------------------
# References
# ----------------------------------------------------------------------------
def rgcn_reference_f32(A_stack, gc1, gc2):
    """Pure-JAX f32 reference mirroring the PyTorch forward exactly."""
    R, N, _ = A_stack.shape
    supports1 = jnp.concatenate([A_stack[r] for r in range(R)], axis=1)
    out1 = jnp.maximum(supports1 @ basis_combine(gc1) + gc1["B"], 0.0)
    supports2 = jnp.concatenate([A_stack[r] @ out1 for r in range(R)], axis=1)
    return jnp.maximum(supports2 @ basis_combine(gc2) + gc2["B"], 0.0)


def rgcn_reference_bf16(A_stack, gc1, gc2):
    """Reference matching the kernel's numerics (bf16 MXU feeds, f32 acc)."""
    R, N, _ = A_stack.shape
    H = gc1["h_dim"]
    A_b = A_stack.astype(jnp.bfloat16)
    V1 = basis_combine(gc1).reshape(R, N, H).astype(jnp.bfloat16)
    V2 = basis_combine(gc2).reshape(R, H, H).astype(jnp.bfloat16)
    out1 = sum(jnp.dot(A_b[r], V1[r], preferred_element_type=jnp.float32)
               for r in range(R))
    out1_b = jnp.maximum(out1 + gc1["B"], 0.0).astype(jnp.bfloat16)
    acc = sum(
        jnp.dot(jnp.dot(A_b[r], out1_b,
                        preferred_element_type=jnp.float32).astype(jnp.bfloat16),
                V2[r], preferred_element_type=jnp.float32)
        for r in range(R))
    return jnp.maximum(acc + gc2["B"], 0.0)


# ----------------------------------------------------------------------------
if __name__ == "__main__":
    # RGCN(i_dim=N, h_dim=32, dropout=0.0, num_rels=4, num_bases=2, featureless=True)
    N = 16          # number of graph nodes (i_dim must equal N for featureless gc1)
    H = 32          # hidden dim
    R = 4           # num relations / predicates
    NB = 2          # num bases
    I_DIM = N

    key = jax.random.PRNGKey(0)
    k_v, k_a, k_g1, k_g2 = jax.random.split(key, 4)

    vertex = jax.random.normal(k_v, (N, I_DIM), jnp.float32)   # unused (featureless gc1)
    A_stack = jax.random.uniform(k_a, (R, N, N), jnp.float32)  # R adjacency matrices

    gc1 = make_rgc_layer_params(k_g1, I_DIM, H, R, NB)   # featureless layer
    gc2 = make_rgc_layer_params(k_g2, H, H, R, NB)       # feature layer

    out = jax.block_until_ready(rgcn_forward(vertex, A_stack, gc1, gc2))
    assert out.shape == (N, H)

    ref_bf16 = rgcn_reference_bf16(A_stack, gc1, gc2)   # same numerics as kernel
    ref_f32 = rgcn_reference_f32(A_stack, gc1, gc2)     # PyTorch-exact f32 math
    assert jnp.allclose(out, ref_bf16, atol=1e-4, rtol=1e-4), (
        float(jnp.max(jnp.abs(out - ref_bf16))))
    assert jnp.allclose(out, ref_f32, atol=5e-2, rtol=5e-2), (
        float(jnp.max(jnp.abs(out - ref_f32))))

    print("KERNEL_OK")
</pallas_src>

<mosaic_0001>
module attributes {stable_mosaic.version = 11 : i64} {
  func.func @_fused_rgcn_kernel(%arg0: memref<4x16x16xbf16, #tpu.memory_space<vmem>>, %arg1: memref<4x16x32xbf16, #tpu.memory_space<vmem>>, %arg2: memref<4x32x128xbf16, #tpu.memory_space<vmem>>, %arg3: memref<1x32xf32, #tpu.memory_space<vmem>>, %arg4: memref<1x128xf32, #tpu.memory_space<vmem>>, %arg5: memref<16x128xf32, #tpu.memory_space<vmem>>) attributes {dimension_semantics = [], scalar_prefetch = 0 : i64, scratch_operands = 0 : i64, tpu.core_type = #tpu.core_type<tc>} {
    %c0 = arith.constant 0 : index
    %c0_0 = arith.constant 0 : index
    %c0_1 = arith.constant 0 : index
    %0 = vector.load %arg0[%c0, %c0_0, %c0_1] : memref<4x16x16xbf16, #tpu.memory_space<vmem>>, vector<1x16x16xbf16>
    %1 = vector.shape_cast %0 : vector<1x16x16xbf16> to vector<16x16xbf16>
    %c0_2 = arith.constant 0 : index
    %c0_3 = arith.constant 0 : index
    %c0_4 = arith.constant 0 : index
    %2 = vector.load %arg1[%c0_2, %c0_3, %c0_4] : memref<4x16x32xbf16, #tpu.memory_space<vmem>>, vector<1x16x32xbf16>
    %3 = vector.shape_cast %2 : vector<1x16x32xbf16> to vector<16x32xbf16>
    %cst = arith.constant dense<0.000000e+00> : vector<16x32xf32>
    %4 = tpu.matmul %1, %3, %cst {dimension_numbers = #tpu.dot_dimension_numbers<[1], [0], [0], [1], [0, 0, 1, 1], [], []>} : vector<16x16xbf16>, vector<16x32xbf16>, vector<16x32xf32> -> vector<16x32xf32>
    %c1 = arith.constant 1 : index
    %c0_5 = arith.constant 0 : index
    %c0_6 = arith.constant 0 : index
    %5 = vector.load %arg0[%c1, %c0_5, %c0_6] : memref<4x16x16xbf16, #tpu.memory_space<vmem>>, vector<1x16x16xbf16>
    %6 = vector.shape_cast %5 : vector<1x16x16xbf16> to vector<16x16xbf16>
    %c1_7 = arith.constant 1 : index
    %c0_8 = arith.constant 0 : index
    %c0_9 = arith.constant 0 : index
    %7 = vector.load %arg1[%c1_7, %c0_8, %c0_9] : memref<4x16x32xbf16, #tpu.memory_space<vmem>>, vector<1x16x32xbf16>
    %8 = vector.shape_cast %7 : vector<1x16x32xbf16> to vector<16x32xbf16>
    %cst_10 = arith.constant dense<0.000000e+00> : vector<16x32xf32>
    %9 = tpu.matmul %6, %8, %cst_10 {dimension_numbers = #tpu.dot_dimension_numbers<[1], [0], [0], [1], [0, 0, 1, 1], [], []>} : vector<16x16xbf16>, vector<16x32xbf16>, vector<16x32xf32> -> vector<16x32xf32>
    %10 = arith.addf %4, %9 : vector<16x32xf32>
    %c2 = arith.constant 2 : index
    %c0_11 = arith.constant 0 : index
    %c0_12 = arith.constant 0 : index
    %11 = vector.load %arg0[%c2, %c0_11, %c0_12] : memref<4x16x16xbf16, #tpu.memory_space<vmem>>, vector<1x16x16xbf16>
    %12 = vector.shape_cast %11 : vector<1x16x16xbf16> to vector<16x16xbf16>
    %c2_13 = arith.constant 2 : index
    %c0_14 = arith.constant 0 : index
    %c0_15 = arith.constant 0 : index
    %13 = vector.load %arg1[%c2_13, %c0_14, %c0_15] : memref<4x16x32xbf16, #tpu.memory_space<vmem>>, vector<1x16x32xbf16>
    %14 = vector.shape_cast %13 : vector<1x16x32xbf16> to vector<16x32xbf16>
    %cst_16 = arith.constant dense<0.000000e+00> : vector<16x32xf32>
    %15 = tpu.matmul %12, %14, %cst_16 {dimension_numbers = #tpu.dot_dimension_numbers<[1], [0], [0], [1], [0, 0, 1, 1], [], []>} : vector<16x16xbf16>, vector<16x32xbf16>, vector<16x32xf32> -> vector<16x32xf32>
    %16 = arith.addf %10, %15 : vector<16x32xf32>
    %c3 = arith.constant 3 : index
    %c0_17 = arith.constant 0 : index
    %c0_18 = arith.constant 0 : index
    %17 = vector.load %arg0[%c3, %c0_17, %c0_18] : memref<4x16x16xbf16, #tpu.memory_space<vmem>>, vector<1x16x16xbf16>
    %18 = vector.shape_cast %17 : vector<1x16x16xbf16> to vector<16x16xbf16>
    %c3_19 = arith.constant 3 : index
    %c0_20 = arith.constant 0 : index
    %c0_21 = arith.constant 0 : index
    %19 = vector.load %arg1[%c3_19, %c0_20, %c0_21] : memref<4x16x32xbf16, #tpu.memory_space<vmem>>, vector<1x16x32xbf16>
    %20 = vector.shape_cast %19 : vector<1x16x32xbf16> to vector<16x32xbf16>
    %cst_22 = arith.constant dense<0.000000e+00> : vector<16x32xf32>
    %21 = tpu.matmul %18, %20, %cst_22 {dimension_numbers = #tpu.dot_dimension_numbers<[1], [0], [0], [1], [0, 0, 1, 1], [], []>} : vector<16x16xbf16>, vector<16x32xbf16>, vector<16x32xf32> -> vector<16x32xf32>
    %22 = arith.addf %16, %21 : vector<16x32xf32>
    %c0_23 = arith.constant 0 : index
    %c0_24 = arith.constant 0 : index
    %23 = vector.load %arg3[%c0_23, %c0_24] : memref<1x32xf32, #tpu.memory_space<vmem>>, vector<1x32xf32>
    %24 = vector.broadcast %23 : vector<1x32xf32> to vector<16x32xf32>
    %25 = arith.addf %22, %24 : vector<16x32xf32>
    %cst_25 = arith.constant 0.000000e+00 : f32
    %26 = vector.broadcast %cst_25 : f32 to vector<16x32xf32>
    %27 = arith.maximumf %25, %26 : vector<16x32xf32>
    %28 = arith.truncf %27 : vector<16x32xf32> to vector<16x32xbf16>
    %c0_26 = arith.constant 0 : index
    %c0_27 = arith.constant 0 : index
    %c0_28 = arith.constant 0 : index
    %29 = vector.load %arg0[%c0_26, %c0_27, %c0_28] : memref<4x16x16xbf16, #tpu.memory_space<vmem>>, vector<1x16x16xbf16>
    %30 = vector.shape_cast %29 : vector<1x16x16xbf16> to vector<16x16xbf16>
    %cst_29 = arith.constant dense<0.000000e+00> : vector<16x32xf32>
    %31 = tpu.matmul %30, %28, %cst_29 {dimension_numbers = #tpu.dot_dimension_numbers<[1], [0], [0], [1], [0, 0, 1, 1], [], []>} : vector<16x16xbf16>, vector<16x32xbf16>, vector<16x32xf32> -> vector<16x32xf32>
    %32 = arith.truncf %31 : vector<16x32xf32> to vector<16x32xbf16>
    %c0_30 = arith.constant 0 : index
    %c0_31 = arith.constant 0 : index
    %c0_32 = arith.constant 0 : index
    %33 = vector.load %arg2[%c0_30, %c0_31, %c0_32] : memref<4x32x128xbf16, #tpu.memory_space<vmem>>, vector<1x32x128xbf16>
    %34 = vector.shape_cast %33 : vector<1x32x128xbf16> to vector<32x128xbf16>
    %cst_33 = arith.constant dense<0.000000e+00> : vector<16x128xf32>
    %35 = tpu.matmul %32, %34, %cst_33 {dimension_numbers = #tpu.dot_dimension_numbers<[1], [0], [0], [1], [0, 0, 1, 1], [], []>} : vector<16x32xbf16>, vector<32x128xbf16>, vector<16x128xf32> -> vector<16x128xf32>
    %c1_34 = arith.constant 1 : index
    %c0_35 = arith.constant 0 : index
    %c0_36 = arith.constant 0 : index
    %36 = vector.load %arg0[%c1_34, %c0_35, %c0_36] : memref<4x16x16xbf16, #tpu.memory_space<vmem>>, vector<1x16x16xbf16>
    %37 = vector.shape_cast %36 : vector<1x16x16xbf16> to vector<16x16xbf16>
    %cst_37 = arith.constant dense<0.000000e+00> : vector<16x32xf32>
    %38 = tpu.matmul %37, %28, %cst_37 {dimension_numbers = #tpu.dot_dimension_numbers<[1], [0], [0], [1], [0, 0, 1, 1], [], []>} : vector<16x16xbf16>, vector<16x32xbf16>, vector<16x32xf32> -> vector<16x32xf32>
    %39 = arith.truncf %38 : vector<16x32xf32> to vector<16x32xbf16>
    %c1_38 = arith.constant 1 : index
    %c0_39 = arith.constant 0 : index
    %c0_40 = arith.constant 0 : index
    %40 = vector.load %arg2[%c1_38, %c0_39, %c0_40] : memref<4x32x128xbf16, #tpu.memory_space<vmem>>, vector<1x32x128xbf16>
    %41 = vector.shape_cast %40 : vector<1x32x128xbf16> to vector<32x128xbf16>
    %cst_41 = arith.constant dense<0.000000e+00> : vector<16x128xf32>
    %42 = tpu.matmul %39, %41, %cst_41 {dimension_numbers = #tpu.dot_dimension_numbers<[1], [0], [0], [1], [0, 0, 1, 1], [], []>} : vector<16x32xbf16>, vector<32x128xbf16>, vector<16x128xf32> -> vector<16x128xf32>
    %43 = arith.addf %35, %42 : vector<16x128xf32>
    %c2_42 = arith.constant 2 : index
    %c0_43 = arith.constant 0 : index
    %c0_44 = arith.constant 0 : index
    %44 = vector.load %arg0[%c2_42, %c0_43, %c0_44] : memref<4x16x16xbf16, #tpu.memory_space<vmem>>, vector<1x16x16xbf16>
    %45 = vector.shape_cast %44 : vector<1x16x16xbf16> to vector<16x16xbf16>
    %cst_45 = arith.constant dense<0.000000e+00> : vector<16x32xf32>
    %46 = tpu.matmul %45, %28, %cst_45 {dimension_numbers = #tpu.dot_dimension_numbers<[1], [0], [0], [1], [0, 0, 1, 1], [], []>} : vector<16x16xbf16>, vector<16x32xbf16>, vector<16x32xf32> -> vector<16x32xf32>
    %47 = arith.truncf %46 : vector<16x32xf32> to vector<16x32xbf16>
    %c2_46 = arith.constant 2 : index
    %c0_47 = arith.constant 0 : index
    %c0_48 = arith.constant 0 : index
    %48 = vector.load %arg2[%c2_46, %c0_47, %c0_48] : memref<4x32x128xbf16, #tpu.memory_space<vmem>>, vector<1x32x128xbf16>
    %49 = vector.shape_cast %48 : vector<1x32x128xbf16> to vector<32x128xbf16>
    %cst_49 = arith.constant dense<0.000000e+00> : vector<16x128xf32>
    %50 = tpu.matmul %47, %49, %cst_49 {dimension_numbers = #tpu.dot_dimension_numbers<[1], [0], [0], [1], [0, 0, 1, 1], [], []>} : vector<16x32xbf16>, vector<32x128xbf16>, vector<16x128xf32> -> vector<16x128xf32>
    %51 = arith.addf %43, %50 : vector<16x128xf32>
    %c3_50 = arith.constant 3 : index
    %c0_51 = arith.constant 0 : index
    %c0_52 = arith.constant 0 : index
    %52 = vector.load %arg0[%c3_50, %c0_51, %c0_52] : memref<4x16x16xbf16, #tpu.memory_space<vmem>>, vector<1x16x16xbf16>
    %53 = vector.shape_cast %52 : vector<1x16x16xbf16> to vector<16x16xbf16>
    %cst_53 = arith.constant dense<0.000000e+00> : vector<16x32xf32>
    %54 = tpu.matmul %53, %28, %cst_53 {dimension_numbers = #tpu.dot_dimension_numbers<[1], [0], [0], [1], [0, 0, 1, 1], [], []>} : vector<16x16xbf16>, vector<16x32xbf16>, vector<16x32xf32> -> vector<16x32xf32>
    %55 = arith.truncf %54 : vector<16x32xf32> to vector<16x32xbf16>
    %c3_54 = arith.constant 3 : index
    %c0_55 = arith.constant 0 : index
    %c0_56 = arith.constant 0 : index
    %56 = vector.load %arg2[%c3_54, %c0_55, %c0_56] : memref<4x32x128xbf16, #tpu.memory_space<vmem>>, vector<1x32x128xbf16>
    %57 = vector.shape_cast %56 : vector<1x32x128xbf16> to vector<32x128xbf16>
    %cst_57 = arith.constant dense<0.000000e+00> : vector<16x128xf32>
    %58 = tpu.matmul %55, %57, %cst_57 {dimension_numbers = #tpu.dot_dimension_numbers<[1], [0], [0], [1], [0, 0, 1, 1], [], []>} : vector<16x32xbf16>, vector<32x128xbf16>, vector<16x128xf32> -> vector<16x128xf32>
    %59 = arith.addf %51, %58 : vector<16x128xf32>
    %c0_58 = arith.constant 0 : index
    %c0_59 = arith.constant 0 : index
    %60 = vector.load %arg4[%c0_58, %c0_59] : memref<1x128xf32, #tpu.memory_space<vmem>>, vector<1x128xf32>
    %61 = vector.broadcast %60 : vector<1x128xf32> to vector<16x128xf32>
    %62 = arith.addf %59, %61 : vector<16x128xf32>
    %cst_60 = arith.constant 0.000000e+00 : f32
    %63 = vector.broadcast %cst_60 : f32 to vector<16x128xf32>
    %64 = arith.maximumf %62, %63 : vector<16x128xf32>
    %c0_61 = arith.constant 0 : index
    %c0_62 = arith.constant 0 : index
    %65 = vector.load %arg5[%c0_61, %c0_62] : memref<16x128xf32, #tpu.memory_space<vmem>>, vector<16x128xf32>
    tpu.vector_store %arg5[%c0_61, %c0_62], %64 {strides = array<i32>} : memref<16x128xf32, #tpu.memory_space<vmem>>, vector<16x128xf32>,
    return
  }
}

</mosaic_0001>

<llo_original>
// kernel: tpu_custom_call.1
$region0: #{tpu_custom_call.1}
  #allocation0 [shape = 'u32[]', space=smem, size = 0x4, offset = 0x4, fixed_abs, tag = 'smem constant byte address 0x4 - core index']
  #allocation1 [shape = 'u32[144,128]{1,0:T(1,128)}', space=vmem, size = 0x12000, scoped, tag = 'internal scratch']
  %s0 = inlined_call_operand.hbm [shape: bf16[4,16,16], index: 0, kind: input, shape index: {}]
  %s1 = inlined_call_operand.hbm [shape: bf16[4,16,32], index: 1, kind: input, shape index: {}]
  %s2 = inlined_call_operand.hbm [shape: bf16[4,32,128], index: 2, kind: input, shape index: {}]
  %s3 = inlined_call_operand.vmem [shape: f32[1,32], index: 3, kind: input, shape index: {}]
  %s4 = inlined_call_operand.vmem [shape: f32[1,128], index: 4, kind: input, shape index: {}]
  %s5 = inlined_call_operand.hbm [shape: f32[16,128], index: 5, kind: output, shape index: {}]
  %s6 = sld [smem:[#allocation0]]
  $region42: #{tpu_custom_call.1} parent=0
    _
  %s8 = ssub.s32 1, %s6
  %s9 = scalar_select 0, %s8, %s6
  $region1: #{tpu_custom_call.1} parent=0
    #allocation2 [shape = 'u8[16384]{0}', space=vmem, size = 0x4000, scoped, tag = 'input window, operand 0, single buffered']
    #allocation3 [shape = 's32[1]{0}', space=sflag, size = 0x4, scoped, tag = 'scoped memory for tpu_custom_call.1']
    #allocation4 [shape = 's32[1]{0}', space=sflag, size = 0x4, scoped, tag = 'scoped memory for tpu_custom_call.1']
    #allocation5 [shape = 'u8[16384]{0}', space=vmem, size = 0x4000, scoped, tag = 'input window, operand 1, single buffered']
    #allocation6 [shape = 's32[1]{0}', space=sflag, size = 0x4, scoped, tag = 'scoped memory for tpu_custom_call.1']
    #allocation7 [shape = 'u8[32768]{0}', space=vmem, size = 0x8000, scoped, tag = 'input window, operand 2, single buffered']
    #allocation8 [shape = 'u8[8192]{0}', space=vmem, size = 0x2000, scoped, tag = 'output window, operand 0, single buffered']
    %10 = vsyncpa [#allocation3], 0
    %11 = vsyncpa [#allocation6], 0
    %12 = vsyncpa [#allocation4], 0
    // Predicated region
    $region2: #{tpu_custom_call.1} parent=1 // pred_check
      _
    $region3: #{tpu_custom_call.1} parent=1 // pred_check_branch
      %14 = sbr.rel (0) target = $region5
    $region4: #{tpu_custom_call.1} parent=1 // pred_region
      %s16 = ssub.s32 512, 512
      %17 = vsyncadd [#allocation3], %s16
      %s18 = sshll.u32 [#allocation2], 4
      %s19 = int_to_ptr.vmem [resolvable:$true] %s18
      %24 = dma.hbm_to_vmem [thread:$0]  %s0, 512, %s19, [#allocation3], 64, 64, 4
    $region5: #{tpu_custom_call.1} parent=1 // pred_fallthru
      _
    // Predicated region
    $region6: #{tpu_custom_call.1} parent=1 // pred_check
      _
    $region7: #{tpu_custom_call.1} parent=1 // pred_check_branch
      %26 = sbr.rel (0) target = $region9
    $region8: #{tpu_custom_call.1} parent=1 // pred_region
      %s28 = ssub.s32 512, 512
      %29 = vsyncadd [#allocation6], %s28
      %s30 = sshll.u32 [#allocation5], 4
      %s31 = int_to_ptr.vmem [resolvable:$true] %s30
      %36 = dma.hbm_to_vmem [thread:$0]  %s1, 512, %s31, [#allocation6], 64, 64, 4
    $region9: #{tpu_custom_call.1} parent=1 // pred_fallthru
      _
    // Predicated region
    $region10: #{tpu_custom_call.1} parent=1 // pred_check
      _
    $region11: #{tpu_custom_call.1} parent=1 // pred_check_branch
      %38 = sbr.rel (0) target = $region13
    $region12: #{tpu_custom_call.1} parent=1 // pred_region
      %s40 = ssub.s32 1024, 1024
      %41 = vsyncadd [#allocation6], %s40
      %s42 = sshll.u32 [#allocation7], 4
      %s43 = int_to_ptr.vmem [resolvable:$true] %s42
      %48 = dma.hbm_to_vmem [thread:$0]  %s2, 1024, %s43, [#allocation6], 64, 64, 4
    $region13: #{tpu_custom_call.1} parent=1 // pred_fallthru
      _
    // Predicated region
    $region14: #{tpu_custom_call.1} parent=1 // pred_check
      _
    $region15: #{tpu_custom_call.1} parent=1 // pred_check_branch
      %50 = sbr.rel (0) target = $region17
    $region16: #{tpu_custom_call.1} parent=1 // pred_region
      _
    $region17: #{tpu_custom_call.1} parent=1 // pred_fallthru
      _
    // Predicated region
    $region18: #{tpu_custom_call.1} parent=1 // pred_check
      _
    $region19: #{tpu_custom_call.1} parent=1 // pred_check_branch
      %52 = sbr.rel (0) target = $region21
    $region20: #{tpu_custom_call.1} parent=1 // pred_region
      _
    $region21: #{tpu_custom_call.1} parent=1 // pred_fallthru
      _
    // Predicated region
    $region22: #{tpu_custom_call.1} parent=1 // pred_check
      _
    $region23: #{tpu_custom_call.1} parent=1 // pred_check_branch
      %54 = sbr.rel (0) target = $region25
    $region24: #{tpu_custom_call.1} parent=1 // pred_region
      %55 = dma.done [#allocation3], 512
    $region25: #{tpu_custom_call.1} parent=1 // pred_fallthru
      _
    // Predicated region
    $region26: #{tpu_custom_call.1} parent=1 // pred_check
      _
    $region27: #{tpu_custom_call.1} parent=1 // pred_check_branch
      %57 = sbr.rel (0) target = $region29
    $region28: #{tpu_custom_call.1} parent=1 // pred_region
      %58 = dma.done [#allocation6], 512
    $region29: #{tpu_custom_call.1} parent=1 // pred_fallthru
      _
    // Predicated region
    $region30: #{tpu_custom_call.1} parent=1 // pred_check
      _
    $region31: #{tpu_custom_call.1} parent=1 // pred_check_branch
      %60 = sbr.rel (0) target = $region33
    $region32: #{tpu_custom_call.1} parent=1 // pred_region
      %61 = dma.done [#allocation6], 1024
    $region33: #{tpu_custom_call.1} parent=1 // pred_fallthru
      _
    %v63 = vld [vmem:[#allocation2] sm:$0xf]
    %v64 = vld [vmem:[#allocation2 + $0x4] sm:$0xf]
    %v65 = vld [vmem:[#allocation5] sm:$0xf]
    %v66 = vld [vmem:[#allocation5 + $0x4] sm:$0xf]
    %s67 = scalar_lea.vmem [#allocation2], 8
    %v68 = vld [vmem:[%s67] sm:$0xf]
    %v69 = vld [vmem:[%s67 + $0x4] sm:$0xf]
    %s70 = scalar_lea.vmem [#allocation5], 8
    %v71 = vld [vmem:[%s70] sm:$0xf]
    %v72 = vld [vmem:[%s70 + $0x4] sm:$0xf]
    %v75 = vunpack.c.l.b16 %v68
    %v76 = vunpack.c.l.b16 %v69
    %v77 = vpack.c.b16 %v76, %v75
    %v80 = vunpack.c.l.b16 %v71
    %v81 = vunpack.c.l.b16 %v72
    %v82 = vpack.c.b16 %v81, %v80
    %vm84 = vcmask 130048
    %v86 = vsel %vm84, %v77, 0
    %88 = vmatprep.subr.bf16.mxu0 0
    %89 = vmatpush1.bf16.msra.mxu0 0
    %90 = vmatprep.subr.bf16.mxu0 0
    %91 = vmatpush1.bf16.msra.mxu0 0
    %92 = vmatprep.subr.bf16.mxu0 0
    %93 = vmatpush1.bf16.msra.mxu0 0
    %94 = vmatprep.subr.bf16.mxu0 0
    %95 = vmatpush1.bf16.msra.mxu0 0
    %96 = vmatprep.subr.bf16.mxu0 0
    %97 = vmatpush1.bf16.msra.mxu0 0
    %98 = vmatprep.subr.bf16.mxu0 0
    %99 = vmatpush1.bf16.msra.mxu0 0
    %100 = vmatprep.subr.bf16.mxu0 0
    %101 = vmatpush1.bf16.msra.mxu0 0
    %102 = vmatprep.subr.bf16.mxu0 0
    %103 = vmatpush1.bf16.msra.mxu0 %v82
    %104 = vmatprep.subr.bf16.mxu0 0
    %105 = vmatpush2.bf16.msra.mxu0 0
    %106 = vmatprep.subr.bf16.mxu0 0
    %107 = vmatpush2.bf16.msra.mxu0 0
    %108 = vmatprep.subr.bf16.mxu0 0
    %109 = vmatpush2.bf16.msra.mxu0 0
    %110 = vmatprep.subr.bf16.mxu0 0
    %111 = vmatpush2.bf16.msra.mxu0 0
    %112 = vmatprep.subr.bf16.mxu0 0
    %113 = vmatpush2.bf16.msra.mxu0 0
    %114 = vmatprep.subr.bf16.mxu0 0
    %115 = vmatpush2.bf16.msra.mxu0 0
    %116 = vmatprep.subr.bf16.mxu0 0
    %117 = vmatpush2.bf16.msra.mxu0 0
    %118 = vmatprep.subr.bf16.mxu0 0
    %119 = vmatpush2.bf16.msra.mxu0 0
    %120 = vmatprep.mubr.bf16.mxu0 0
    %121 = vmatmul.mubr.bf16.gmra.mxu0 %v86
    %v122 = vpop.f32.mrf.mxu0
    %v123 = vadd.f32 0.0, %v122
    %v124 = vpop.f32.mrf.mxu0
    %v125 = vpop.f32.mrf.mxu0
    %v126 = vadd.f32 0.0, %v125
    %v127 = vpop.f32.mrf.mxu0
    %128 = vdwg.mxu0
    %v131 = vunpack.c.l.b16 %v63
    %v132 = vunpack.c.l.b16 %v64
    %v133 = vpack.c.b16 %v132, %v131
    %v136 = vunpack.c.l.b16 %v65
    %v137 = vunpack.c.l.b16 %v66
    %v138 = vpack.c.b16 %v137, %v136
    %v141 = vsel %vm84, %v133, 0
    %143 = vmatprep.subr.bf16.mxu0 0
    %144 = vmatpush1.bf16.msra.mxu0 0
    %145 = vmatprep.subr.bf16.mxu0 0
    %146 = vmatpush1.bf16.msra.mxu0 0
    %147 = vmatprep.subr.bf16.mxu0 0
    %148 = vmatpush1.bf16.msra.mxu0 0
    %149 = vmatprep.subr.bf16.mxu0 0
    %150 = vmatpush1.bf16.msra.mxu0 0
    %151 = vmatprep.subr.bf16.mxu0 0
    %152 = vmatpush1.bf16.msra.mxu0 0
    %153 = vmatprep.subr.bf16.mxu0 0
    %154 = vmatpush1.bf16.msra.mxu0 0
    %155 = vmatprep.subr.bf16.mxu0 0
    %156 = vmatpush1.bf16.msra.mxu0 0
    %157 = vmatprep.subr.bf16.mxu0 0
    %158 = vmatpush1.bf16.msra.mxu0 %v138
    %159 = vmatprep.subr.bf16.mxu0 0
    %160 = vmatpush2.bf16.msra.mxu0 0
    %161 = vmatprep.subr.bf16.mxu0 0
    %162 = vmatpush2.bf16.msra.mxu0 0
    %163 = vmatprep.subr.bf16.mxu0 0
    %164 = vmatpush2.bf16.msra.mxu0 0
    %165 = vmatprep.subr.bf16.mxu0 0
    %166 = vmatpush2.bf16.msra.mxu0 0
    %167 = vmatprep.subr.bf16.mxu0 0
    %168 = vmatpush2.bf16.msra.mxu0 0
    %169 = vmatprep.subr.bf16.mxu0 0
    %170 = vmatpush2.bf16.msra.mxu0 0
    %171 = vmatprep.subr.bf16.mxu0 0
    %172 = vmatpush2.bf16.msra.mxu0 0
    %173 = vmatprep.subr.bf16.mxu0 0
    %174 = vmatpush2.bf16.msra.mxu0 0
    %175 = vmatprep.mubr.bf16.mxu0 0
    %176 = vmatmul.mubr.bf16.gmra.mxu0 %v141
    %v177 = vpop.f32.mrf.mxu0
    %v178 = vadd.f32 %v123, %v177
    %v179 = vpop.f32.mrf.mxu0
    %v180 = vpop.f32.mrf.mxu0
    %v181 = vadd.f32 %v126, %v180
    %v182 = vpop.f32.mrf.mxu0
    %183 = vdwg.mxu0
    %s184 = scalar_lea.vmem [#allocation2], 16
    %v185 = vld [vmem:[%s184] sm:$0xf]
    %v186 = vld [vmem:[%s184 + $0x4] sm:$0xf]
    %s187 = scalar_lea.vmem [#allocation5], 16
    %v188 = vld [vmem:[%s187] sm:$0xf]
    %v189 = vld [vmem:[%s187 + $0x4] sm:$0xf]
    %v192 = vunpack.c.l.b16 %v185
    %v193 = vunpack.c.l.b16 %v186
    %v194 = vpack.c.b16 %v193, %v192
    %v197 = vunpack.c.l.b16 %v188
    %v198 = vunpack.c.l.b16 %v189
    %v199 = vpack.c.b16 %v198, %v197
    %v202 = vsel %vm84, %v194, 0
    %204 = vmatprep.subr.bf16.mxu0 0
    %205 = vmatpush1.bf16.msra.mxu0 0
    %206 = vmatprep.subr.bf16.mxu0 0
    %207 = vmatpush1.bf16.msra.mxu0 0
    %208 = vmatprep.subr.bf16.mxu0 0
    %209 = vmatpush1.bf16.msra.mxu0 0
    %210 = vmatprep.subr.bf16.mxu0 0
    %211 = vmatpush1.bf16.msra.mxu0 0
    %212 = vmatprep.subr.bf16.mxu0 0
    %213 = vmatpush1.bf16.msra.mxu0 0
    %214 = vmatprep.subr.bf16.mxu0 0
    %215 = vmatpush1.bf16.msra.mxu0 0
    %216 = vmatprep.subr.bf16.mxu0 0
    %217 = vmatpush1.bf16.msra.mxu0 0
    %218 = vmatprep.subr.bf16.mxu0 0
    %219 = vmatpush1.bf16.msra.mxu0 %v199
    %220 = vmatprep.subr.bf16.mxu0 0
    %221 = vmatpush2.bf16.msra.mxu0 0
    %222 = vmatprep.subr.bf16.mxu0 0
    %223 = vmatpush2.bf16.msra.mxu0 0
    %224 = vmatprep.subr.bf16.mxu0 0
    %225 = vmatpush2.bf16.msra.mxu0 0
    %226 = vmatprep.subr.bf16.mxu0 0
    %227 = vmatpush2.bf16.msra.mxu0 0
    %228 = vmatprep.subr.bf16.mxu0 0
    %229 = vmatpush2.bf16.msra.mxu0 0
    %230 = vmatprep.subr.bf16.mxu0 0
    %231 = vmatpush2.bf16.msra.mxu0 0
    %232 = vmatprep.subr.bf16.mxu0 0
    %233 = vmatpush2.bf16.msra.mxu0 0
    %234 = vmatprep.subr.bf16.mxu0 0
    %235 = vmatpush2.bf16.msra.mxu0 0
    %236 = vmatprep.mubr.bf16.mxu0 0
    %237 = vmatmul.mubr.bf16.gmra.mxu0 %v202
    %v238 = vpop.f32.mrf.mxu0
    %v239 = vadd.f32 0.0, %v238
    %v240 = vpop.f32.mrf.mxu0
    %v241 = vpop.f32.mrf.mxu0
    %v242 = vadd.f32 0.0, %v241
    %v243 = vpop.f32.mrf.mxu0
    %244 = vdwg.mxu0
    %v245 = vadd.f32 %v178, %v239
    %v246 = vadd.f32 %v181, %v242
    %s247 = scalar_lea.vmem [#allocation2], 24
    %v248 = vld [vmem:[%s247] sm:$0xf]
    %v249 = vld [vmem:[%s247 + $0x4] sm:$0xf]
    %s250 = scalar_lea.vmem [#allocation5], 24
    %v251 = vld [vmem:[%s250] sm:$0xf]
    %v252 = vld [vmem:[%s250 + $0x4] sm:$0xf]
    %v255 = vunpack.c.l.b16 %v248
    %v256 = vunpack.c.l.b16 %v249
    %v257 = vpack.c.b16 %v256, %v255
    %v260 = vunpack.c.l.b16 %v251
    %v261 = vunpack.c.l.b16 %v252
    %v262 = vpack.c.b16 %v261, %v260
    %v265 = vsel %vm84, %v257, 0
    %267 = vmatprep.subr.bf16.mxu0 0
    %268 = vmatpush1.bf16.msra.mxu0 0
    %269 = vmatprep.subr.bf16.mxu0 0
    %270 = vmatpush1.bf16.msra.mxu0 0
    %271 = vmatprep.subr.bf16.mxu0 0
    %272 = vmatpush1.bf16.msra.mxu0 0
    %273 = vmatprep.subr.bf16.mxu0 0
    %274 = vmatpush1.bf16.msra.mxu0 0
    %275 = vmatprep.subr.bf16.mxu0 0
    %276 = vmatpush1.bf16.msra.mxu0 0
    %277 = vmatprep.subr.bf16.mxu0 0
    %278 = vmatpush1.bf16.msra.mxu0 0
    %279 = vmatprep.subr.bf16.mxu0 0
    %280 = vmatpush1.bf16.msra.mxu0 0
    %281 = vmatprep.subr.bf16.mxu0 0
    %282 = vmatpush1.bf16.msra.mxu0 %v262
    %283 = vmatprep.subr.bf16.mxu0 0
    %284 = vmatpush2.bf16.msra.mxu0 0
    %285 = vmatprep.subr.bf16.mxu0 0
    %286 = vmatpush2.bf16.msra.mxu0 0
    %287 = vmatprep.subr.bf16.mxu0 0
    %288 = vmatpush2.bf16.msra.mxu0 0
    %289 = vmatprep.subr.bf16.mxu0 0
    %290 = vmatpush2.bf16.msra.mxu0 0
    %291 = vmatprep.subr.bf16.mxu0 0
    %292 = vmatpush2.bf16.msra.mxu0 0
    %293 = vmatprep.subr.bf16.mxu0 0
    %294 = vmatpush2.bf16.msra.mxu0 0
    %295 = vmatprep.subr.bf16.mxu0 0
    %296 = vmatpush2.bf16.msra.mxu0 0
    %297 = vmatprep.subr.bf16.mxu0 0
    %298 = vmatpush2.bf16.msra.mxu0 0
    %299 = vmatprep.mubr.bf16.mxu0 0
    %300 = vmatmul.mubr.bf16.gmra.mxu0 %v265
    %v301 = vpop.f32.mrf.mxu0
    %v302 = vadd.f32 0.0, %v301
    %v303 = vpop.f32.mrf.mxu0
    %v304 = vpop.f32.mrf.mxu0
    %v305 = vadd.f32 0.0, %v304
    %v306 = vpop.f32.mrf.mxu0
    %307 = vdwg.mxu0
    %v308 = vadd.f32 %v245, %v302
    %v309 = vadd.f32 %v246, %v305
    %v310 = vld [vmem:[%s3] sm:$0x1]
    %v312 = vlaneseq
    %v313 = vshrl.u32 %v312, 7
    %v314 = vsub.s32 0, %v313
    %v315 = vrot.slane %v310, %v314
    %v317 = vadd.f32 %v308, %v315
    %v318 = vadd.f32 %v309, %v315
    %v319 = vmax.f32 %v317, 0.0
    %v320 = vmax.f32 %v318, 0.0
    %v321 = vpack.c.bf16 %v320, %v319
    %322 = vmatprep.subr.bf16.mxu0 0
    %323 = vmatpush1.bf16.msra.mxu0 0
    %324 = vmatprep.subr.bf16.mxu0 0
    %325 = vmatpush1.bf16.msra.mxu0 0
    %326 = vmatprep.subr.bf16.mxu0 0
    %327 = vmatpush1.bf16.msra.mxu0 0
    %328 = vmatprep.subr.bf16.mxu0 0
    %329 = vmatpush1.bf16.msra.mxu0 0
    %330 = vmatprep.subr.bf16.mxu0 0
    %331 = vmatpush1.bf16.msra.mxu0 0
    %332 = vmatprep.subr.bf16.mxu0 0
    %333 = vmatpush1.bf16.msra.mxu0 0
    %334 = vmatprep.subr.bf16.mxu0 0
    %335 = vmatpush1.bf16.msra.mxu0 0
    %336 = vmatprep.subr.bf16.mxu0 0
    %337 = vmatpush1.bf16.msra.mxu0 %v321
    %338 = vmatprep.subr.bf16.mxu0 0
    %339 = vmatpush2.bf16.msra.mxu0 0
    %340 = vmatprep.subr.bf16.mxu0 0
    %341 = vmatpush2.bf16.msra.mxu0 0
    %342 = vmatprep.subr.bf16.mxu0 0
    %343 = vmatpush2.bf16.msra.mxu0 0
    %344 = vmatprep.subr.bf16.mxu0 0
    %345 = vmatpush2.bf16.msra.mxu0 0
    %346 = vmatprep.subr.bf16.mxu0 0
    %347 = vmatpush2.bf16.msra.mxu0 0
    %348 = vmatprep.subr.bf16.mxu0 0
    %349 = vmatpush2.bf16.msra.mxu0 0
    %350 = vmatprep.subr.bf16.mxu0 0
    %351 = vmatpush2.bf16.msra.mxu0 0
    %352 = vmatprep.subr.bf16.mxu0 0
    %353 = vmatpush2.bf16.msra.mxu0 0
    %354 = vmatprep.mubr.bf16.mxu0 0
    %355 = vmatmul.mubr.bf16.gmra.mxu0 %v141
    %v356 = vpop.f32.mrf.mxu0
    %v357 = vadd.f32 0.0, %v356
    %v358 = vpop.f32.mrf.mxu0
    %v359 = vpop.f32.mrf.mxu0
    %v360 = vadd.f32 0.0, %v359
    %v361 = vpop.f32.mrf.mxu0
    %362 = vdwg.mxu0
    %v363 = vpack.c.bf16 %v360, %v357
    %v364 = vld [vmem:[#allocation7] sm:$0xf]
    %v365 = vld [vmem:[#allocation7 + $0x4] sm:$0xf]
    %v366 = vld [vmem:[#allocation7 + $0x8] sm:$0xf]
    %v367 = vld [vmem:[#allocation7 + $0xc] sm:$0xf]
    %368 = vmatprep.subr.bf16.mxu0 0
    %369 = vmatpush1.bf16.msra.mxu0 0
    %370 = vmatprep.subr.bf16.mxu0 0
    %371 = vmatpush1.bf16.msra.mxu0 0
    %372 = vmatprep.subr.bf16.mxu0 0
    %373 = vmatpush1.bf16.msra.mxu0 0
    %374 = vmatprep.subr.bf16.mxu0 0
    %375 = vmatpush1.bf16.msra.mxu0 0
    %376 = vmatprep.subr.bf16.mxu0 0
    %377 = vmatpush1.bf16.msra.mxu0 0
    %378 = vmatprep.subr.bf16.mxu0 0
    %379 = vmatpush1.bf16.msra.mxu0 0
    %380 = vmatprep.subr.bf16.mxu0 0
    %381 = vmatpush1.bf16.msra.mxu0 0
    %382 = vmatprep.subr.bf16.mxu0 0
    %383 = vmatpush1.bf16.msra.mxu0 %v321
    %384 = vmatprep.subr.bf16.mxu0 0
    %385 = vmatpush2.bf16.msra.mxu0 0
    %386 = vmatprep.subr.bf16.mxu0 0
    %387 = vmatpush2.bf16.msra.mxu0 0
    %388 = vmatprep.subr.bf16.mxu0 0
    %389 = vmatpush2.bf16.msra.mxu0 0
    %390 = vmatprep.subr.bf16.mxu0 0
    %391 = vmatpush2.bf16.msra.mxu0 0
    %392 = vmatprep.subr.bf16.mxu0 0
    %393 = vmatpush2.bf16.msra.mxu0 0
    %394 = vmatprep.subr.bf16.mxu0 0
    %395 = vmatpush2.bf16.msra.mxu0 0
    %396 = vmatprep.subr.bf16.mxu0 0
    %397 = vmatpush2.bf16.msra.mxu0 0
    %398 = vmatprep.subr.bf16.mxu0 0
    %399 = vmatpush2.bf16.msra.mxu0 0
    %400 = vmatprep.mubr.bf16.mxu0 0
    %401 = vmatmul.mubr.bf16.gmra.mxu0 %v86
    %v402 = vpop.f32.mrf.mxu0
    %v403 = vadd.f32 0.0, %v402
    %v404 = vpop.f32.mrf.mxu0
    %v405 = vpop.f32.mrf.mxu0
    %v406 = vadd.f32 0.0, %v405
    %v407 = vpop.f32.mrf.mxu0
    %408 = vdwg.mxu0
    %v409 = vpack.c.bf16 %v406, %v403
    %s410 = scalar_lea.vmem [#allocation7], 16
    %v411 = vld [vmem:[%s410] sm:$0xf]
    %v412 = vld [vmem:[%s410 + $0x4] sm:$0xf]
    %v413 = vld [vmem:[%s410 + $0x8] sm:$0xf]
    %v414 = vld [vmem:[%s410 + $0xc] sm:$0xf]
    %v419 = vunpack.c.l.b16 %v411
    %v420 = vunpack.c.l.b16 %v412
    %v421 = vunpack.c.l.b16 %v413
    %v422 = vunpack.c.l.b16 %v414
    %v423 = vpack.c.b16 %v420, %v419
    %v424 = vpack.c.b16 %v422, %v421
    %vm427 = vcmask 261120
    %v429 = vsel %vm427, %v409, 0
    %431 = vmatprep.subr.bf16.mxu0 0
    %432 = vmatpush1.bf16.msra.mxu0 0
    %433 = vmatprep.subr.bf16.mxu0 0
    %434 = vmatpush1.bf16.msra.mxu0 0
    %435 = vmatprep.subr.bf16.mxu0 0
    %436 = vmatpush1.bf16.msra.mxu0 0
    %437 = vmatprep.subr.bf16.mxu0 0
    %438 = vmatpush1.bf16.msra.mxu0 0
    %439 = vmatprep.subr.bf16.mxu0 0
    %440 = vmatpush1.bf16.msra.mxu0 0
    %441 = vmatprep.subr.bf16.mxu0 0
    %442 = vmatpush1.bf16.msra.mxu0 0
    %443 = vmatprep.subr.bf16.mxu0 0
    %444 = vmatpush1.bf16.msra.mxu0 %v424
    %445 = vmatprep.subr.bf16.mxu0 0
    %446 = vmatpush1.bf16.msra.mxu0 %v423
    %447 = vmatprep.subr.bf16.mxu0 0
    %448 = vmatpush2.bf16.msra.mxu0 0
    %449 = vmatprep.subr.bf16.mxu0 0
    %450 = vmatpush2.bf16.msra.mxu0 0
    %451 = vmatprep.subr.bf16.mxu0 0
    %452 = vmatpush2.bf16.msra.mxu0 0
    %453 = vmatprep.subr.bf16.mxu0 0
    %454 = vmatpush2.bf16.msra.mxu0 0
    %455 = vmatprep.subr.bf16.mxu0 0
    %456 = vmatpush2.bf16.msra.mxu0 0
    %457 = vmatprep.subr.bf16.mxu0 0
    %458 = vmatpush2.bf16.msra.mxu0 0
    %459 = vmatprep.subr.bf16.mxu0 0
    %460 = vmatpush2.bf16.msra.mxu0 0
    %461 = vmatprep.subr.bf16.mxu0 0
    %462 = vmatpush2.bf16.msra.mxu0 0
    %463 = vmatprep.mubr.bf16.mxu0 0
    %464 = vmatmul.mubr.bf16.gmra.mxu0 %v429
    %v465 = vpop.f32.mrf.mxu0
    %v466 = vadd.f32 0.0, %v465
    %v467 = vpop.f32.mrf.mxu0
    %v468 = vpop.f32.mrf.mxu0
    %v469 = vadd.f32 0.0, %v468
    %v470 = vpop.f32.mrf.mxu0
    %471 = vdwg.mxu0
    %v476 = vunpack.c.l.b16 %v364
    %v477 = vunpack.c.l.b16 %v365
    %v478 = vunpack.c.l.b16 %v366
    %v479 = vunpack.c.l.b16 %v367
    %v480 = vpack.c.b16 %v477, %v476
    %v481 = vpack.c.b16 %v479, %v478
    %v485 = vsel %vm427, %v363, 0
    %487 = vmatprep.subr.bf16.mxu0 0
    %488 = vmatpush1.bf16.msra.mxu0 0
    %489 = vmatprep.subr.bf16.mxu0 0
    %490 = vmatpush1.bf16.msra.mxu0 0
    %491 = vmatprep.subr.bf16.mxu0 0
    %492 = vmatpush1.bf16.msra.mxu0 0
    %493 = vmatprep.subr.bf16.mxu0 0
    %494 = vmatpush1.bf16.msra.mxu0 0
    %495 = vmatprep.subr.bf16.mxu0 0
    %496 = vmatpush1.bf16.msra.mxu0 0
    %497 = vmatprep.subr.bf16.mxu0 0
    %498 = vmatpush1.bf16.msra.mxu0 0
    %499 = vmatprep.subr.bf16.mxu0 0
    %500 = vmatpush1.bf16.msra.mxu0 %v481
    %501 = vmatprep.subr.bf16.mxu0 0
    %502 = vmatpush1.bf16.msra.mxu0 %v480
    %503 = vmatprep.subr.bf16.mxu0 0
    %504 = vmatpush2.bf16.msra.mxu0 0
    %505 = vmatprep.subr.bf16.mxu0 0
    %506 = vmatpush2.bf16.msra.mxu0 0
    %507 = vmatprep.subr.bf16.mxu0 0
    %508 = vmatpush2.bf16.msra.mxu0 0
    %509 = vmatprep.subr.bf16.mxu0 0
    %510 = vmatpush2.bf16.msra.mxu0 0
    %511 = vmatprep.subr.bf16.mxu0 0
    %512 = vmatpush2.bf16.msra.mxu0 0
    %513 = vmatprep.subr.bf16.mxu0 0
    %514 = vmatpush2.bf16.msra.mxu0 0
    %515 = vmatprep.subr.bf16.mxu0 0
    %516 = vmatpush2.bf16.msra.mxu0 0
    %517 = vmatprep.subr.bf16.mxu0 0
    %518 = vmatpush2.bf16.msra.mxu0 0
    %519 = vmatprep.mubr.bf16.mxu0 0
    %520 = vmatmul.mubr.bf16.gmra.mxu0 %v485
    %v521 = vpop.f32.mrf.mxu0
    %v522 = vadd.f32 %v466, %v521
    %v523 = vpop.f32.mrf.mxu0
    %v524 = vpop.f32.mrf.mxu0
    %v525 = vadd.f32 %v469, %v524
    %v526 = vpop.f32.mrf.mxu0
    %527 = vdwg.mxu0
    %528 = vmatprep.subr.bf16.mxu0 0
    %529 = vmatpush1.bf16.msra.mxu0 0
    %530 = vmatprep.subr.bf16.mxu0 0
    %531 = vmatpush1.bf16.msra.mxu0 0
    %532 = vmatprep.subr.bf16.mxu0 0
    %533 = vmatpush1.bf16.msra.mxu0 0
    %534 = vmatprep.subr.bf16.mxu0 0
    %535 = vmatpush1.bf16.msra.mxu0 0
    %536 = vmatprep.subr.bf16.mxu0 0
    %537 = vmatpush1.bf16.msra.mxu0 0
    %538 = vmatprep.subr.bf16.mxu0 0
    %539 = vmatpush1.bf16.msra.mxu0 0
    %540 = vmatprep.subr.bf16.mxu0 0
    %541 = vmatpush1.bf16.msra.mxu0 0
    %542 = vmatprep.subr.bf16.mxu0 0
    %543 = vmatpush1.bf16.msra.mxu0 %v321
    %544 = vmatprep.subr.bf16.mxu0 0
    %545 = vmatpush2.bf16.msra.mxu0 0
    %546 = vmatprep.subr.bf16.mxu0 0
    %547 = vmatpush2.bf16.msra.mxu0 0
    %548 = vmatprep.subr.bf16.mxu0 0
    %549 = vmatpush2.bf16.msra.mxu0 0
    %550 = vmatprep.subr.bf16.mxu0 0
    %551 = vmatpush2.bf16.msra.mxu0 0
    %552 = vmatprep.subr.bf16.mxu0 0
    %553 = vmatpush2.bf16.msra.mxu0 0
    %554 = vmatprep.subr.bf16.mxu0 0
    %555 = vmatpush2.bf16.msra.mxu0 0
    %556 = vmatprep.subr.bf16.mxu0 0
    %557 = vmatpush2.bf16.msra.mxu0 0
    %558 = vmatprep.subr.bf16.mxu0 0
    %559 = vmatpush2.bf16.msra.mxu0 0
    %560 = vmatprep.mubr.bf16.mxu0 0
    %561 = vmatmul.mubr.bf16.gmra.mxu0 %v202
    %v562 = vpop.f32.mrf.mxu0
    %v563 = vadd.f32 0.0, %v562
    %v564 = vpop.f32.mrf.mxu0
    %v565 = vpop.f32.mrf.mxu0
    %v566 = vadd.f32 0.0, %v565
    %v567 = vpop.f32.mrf.mxu0
    %568 = vdwg.mxu0
    %v569 = vpack.c.bf16 %v566, %v563
    %s570 = scalar_lea.vmem [#allocation7], 32
    %v571 = vld [vmem:[%s570] sm:$0xf]
    %v572 = vld [vmem:[%s570 + $0x4] sm:$0xf]
    %v573 = vld [vmem:[%s570 + $0x8] sm:$0xf]
    %v574 = vld [vmem:[%s570 + $0xc] sm:$0xf]
    %v579 = vunpack.c.l.b16 %v571
    %v580 = vunpack.c.l.b16 %v572
    %v581 = vunpack.c.l.b16 %v573
    %v582 = vunpack.c.l.b16 %v574
    %v583 = vpack.c.b16 %v580, %v579
    %v584 = vpack.c.b16 %v582, %v581
    %v588 = vsel %vm427, %v569, 0
    %590 = vmatprep.subr.bf16.mxu0 0
    %591 = vmatpush1.bf16.msra.mxu0 0
    %592 = vmatprep.subr.bf16.mxu0 0
    %593 = vmatpush1.bf16.msra.mxu0 0
    %594 = vmatprep.subr.bf16.mxu0 0
    %595 = vmatpush1.bf16.msra.mxu0 0
    %596 = vmatprep.subr.bf16.mxu0 0
    %597 = vmatpush1.bf16.msra.mxu0 0
    %598 = vmatprep.subr.bf16.mxu0 0
    %599 = vmatpush1.bf16.msra.mxu0 0
    %600 = vmatprep.subr.bf16.mxu0 0
    %601 = vmatpush1.bf16.msra.mxu0 0
    %602 = vmatprep.subr.bf16.mxu0 0
    %603 = vmatpush1.bf16.msra.mxu0 %v584
    %604 = vmatprep.subr.bf16.mxu0 0
    %605 = vmatpush1.bf16.msra.mxu0 %v583
    %606 = vmatprep.subr.bf16.mxu0 0
    %607 = vmatpush2.bf16.msra.mxu0 0
    %608 = vmatprep.subr.bf16.mxu0 0
    %609 = vmatpush2.bf16.msra.mxu0 0
    %610 = vmatprep.subr.bf16.mxu0 0
    %611 = vmatpush2.bf16.msra.mxu0 0
    %612 = vmatprep.subr.bf16.mxu0 0
    %613 = vmatpush2.bf16.msra.mxu0 0
    %614 = vmatprep.subr.bf16.mxu0 0
    %615 = vmatpush2.bf16.msra.mxu0 0
    %616 = vmatprep.subr.bf16.mxu0 0
    %617 = vmatpush2.bf16.msra.mxu0 0
    %618 = vmatprep.subr.bf16.mxu0 0
    %619 = vmatpush2.bf16.msra.mxu0 0
    %620 = vmatprep.subr.bf16.mxu0 0
    %621 = vmatpush2.bf16.msra.mxu0 0
    %622 = vmatprep.mubr.bf16.mxu0 0
    %623 = vmatmul.mubr.bf16.gmra.mxu0 %v588
    %v624 = vpop.f32.mrf.mxu0
    %v625 = vadd.f32 0.0, %v624
    %v626 = vpop.f32.mrf.mxu0
    %v627 = vpop.f32.mrf.mxu0
    %v628 = vadd.f32 0.0, %v627
    %v629 = vpop.f32.mrf.mxu0
    %630 = vdwg.mxu0
    %v631 = vadd.f32 %v522, %v625
    %v632 = vadd.f32 %v525, %v628
    %633 = vmatprep.subr.bf16.mxu0 0
    %634 = vmatpush1.bf16.msra.mxu0 0
    %635 = vmatprep.subr.bf16.mxu0 0
    %636 = vmatpush1.bf16.msra.mxu0 0
    %637 = vmatprep.subr.bf16.mxu0 0
    %638 = vmatpush1.bf16.msra.mxu0 0
    %639 = vmatprep.subr.bf16.mxu0 0
    %640 = vmatpush1.bf16.msra.mxu0 0
    %641 = vmatprep.subr.bf16.mxu0 0
    %642 = vmatpush1.bf16.msra.mxu0 0
    %643 = vmatprep.subr.bf16.mxu0 0
    %644 = vmatpush1.bf16.msra.mxu0 0
    %645 = vmatprep.subr.bf16.mxu0 0
    %646 = vmatpush1.bf16.msra.mxu0 0
    %647 = vmatprep.subr.bf16.mxu0 0
    %648 = vmatpush1.bf16.msra.mxu0 %v321
    %649 = vmatprep.subr.bf16.mxu0 0
    %650 = vmatpush2.bf16.msra.mxu0 0
    %651 = vmatprep.subr.bf16.mxu0 0
    %652 = vmatpush2.bf16.msra.mxu0 0
    %653 = vmatprep.subr.bf16.mxu0 0
    %654 = vmatpush2.bf16.msra.mxu0 0
    %655 = vmatprep.subr.bf16.mxu0 0
    %656 = vmatpush2.bf16.msra.mxu0 0
    %657 = vmatprep.subr.bf16.mxu0 0
    %658 = vmatpush2.bf16.msra.mxu0 0
    %659 = vmatprep.subr.bf16.mxu0 0
    %660 = vmatpush2.bf16.msra.mxu0 0
    %661 = vmatprep.subr.bf16.mxu0 0
    %662 = vmatpush2.bf16.msra.mxu0 0
    %663 = vmatprep.subr.bf16.mxu0 0
    %664 = vmatpush2.bf16.msra.mxu0 0
    %665 = vmatprep.mubr.bf16.mxu0 0
    %666 = vmatmul.mubr.bf16.gmra.mxu0 %v265
    %v667 = vpop.f32.mrf.mxu0
    %v668 = vadd.f32 0.0, %v667
    %v669 = vpop.f32.mrf.mxu0
    %v670 = vpop.f32.mrf.mxu0
    %v671 = vadd.f32 0.0, %v670
    %v672 = vpop.f32.mrf.mxu0
    %673 = vdwg.mxu0
    %v674 = vpack.c.bf16 %v671, %v668
    %s675 = scalar_lea.vmem [#allocation7], 48
    %v676 = vld [vmem:[%s675] sm:$0xf]
    %v677 = vld [vmem:[%s675 + $0x4] sm:$0xf]
    %v678 = vld [vmem:[%s675 + $0x8] sm:$0xf]
    %v679 = vld [vmem:[%s675 + $0xc] sm:$0xf]
    %v684 = vunpack.c.l.b16 %v676
    %v685 = vunpack.c.l.b16 %v677
    %v686 = vunpack.c.l.b16 %v678
    %v687 = vunpack.c.l.b16 %v679
    %v688 = vpack.c.b16 %v685, %v684
    %v689 = vpack.c.b16 %v687, %v686
    %v693 = vsel %vm427, %v674, 0
    %695 = vmatprep.subr.bf16.mxu0 0
    %696 = vmatpush1.bf16.msra.mxu0 0
    %697 = vmatprep.subr.bf16.mxu0 0
    %698 = vmatpush1.bf16.msra.mxu0 0
    %699 = vmatprep.subr.bf16.mxu0 0
    %700 = vmatpush1.bf16.msra.mxu0 0
    %701 = vmatprep.subr.bf16.mxu0 0
    %702 = vmatpush1.bf16.msra.mxu0 0
    %703 = vmatprep.subr.bf16.mxu0 0
    %704 = vmatpush1.bf16.msra.mxu0 0
    %705 = vmatprep.subr.bf16.mxu0 0
    %706 = vmatpush1.bf16.msra.mxu0 0
    %707 = vmatprep.subr.bf16.mxu0 0
    %708 = vmatpush1.bf16.msra.mxu0 %v689
    %709 = vmatprep.subr.bf16.mxu0 0
    %710 = vmatpush1.bf16.msra.mxu0 %v688
    %711 = vmatprep.subr.bf16.mxu0 0
    %712 = vmatpush2.bf16.msra.mxu0 0
    %713 = vmatprep.subr.bf16.mxu0 0
    %714 = vmatpush2.bf16.msra.mxu0 0
    %715 = vmatprep.subr.bf16.mxu0 0
    %716 = vmatpush2.bf16.msra.mxu0 0
    %717 = vmatprep.subr.bf16.mxu0 0
    %718 = vmatpush2.bf16.msra.mxu0 0
    %719 = vmatprep.subr.bf16.mxu0 0
    %720 = vmatpush2.bf16.msra.mxu0 0
    %721 = vmatprep.subr.bf16.mxu0 0
    %722 = vmatpush2.bf16.msra.mxu0 0
    %723 = vmatprep.subr.bf16.mxu0 0
    %724 = vmatpush2.bf16.msra.mxu0 0
    %725 = vmatprep.subr.bf16.mxu0 0
    %726 = vmatpush2.bf16.msra.mxu0 0
    %727 = vmatprep.mubr.bf16.mxu0 0
    %728 = vmatmul.mubr.bf16.gmra.mxu0 %v693
    %v729 = vpop.f32.mrf.mxu0
    %v730 = vadd.f32 0.0, %v729
    %v731 = vpop.f32.mrf.mxu0
    %v732 = vpop.f32.mrf.mxu0
    %v733 = vadd.f32 0.0, %v732
    %v734 = vpop.f32.mrf.mxu0
    %735 = vdwg.mxu0
    %v736 = vadd.f32 %v631, %v730
    %v737 = vadd.f32 %v632, %v733
    %v738 = vld [vmem:[%s4] sm:$0x1]
    %v740 = vlaneseq
    %v741 = vshrl.u32 %v740, 7
    %v742 = vsub.s32 0, %v741
    %v743 = vrot.slane %v738, %v742
    %v745 = vadd.f32 %v736, %v743
    %v746 = vadd.f32 %v737, %v743
    %v747 = vmax.f32 %v745, 0.0
    %v748 = vmax.f32 %v746, 0.0
    %749 = vst [vmem:[#allocation8] sm:$0xff] %v747
    %750 = vst [vmem:[#allocation8 + $0x8] sm:$0xff] %v748
    // Predicated region
    $region34: #{tpu_custom_call.1} parent=1 // pred_check
      _
    $region35: #{tpu_custom_call.1} parent=1 // pred_check_branch
      %752 = sbr.rel (0) target = $region37
    $region36: #{tpu_custom_call.1} parent=1 // pred_region
      %s754 = ssub.s32 256, 256
      %755 = vsyncadd [#allocation4], %s754
      %s756 = sshll.u32 [#allocation8], 4
      %s757 = int_to_ptr.vmem [resolvable:$true] %s756
      %762 = dma.vmem_to_hbm [thread:$0]  %s757, 256, %s5, [#allocation4], 128, 128, 8
    $region37: #{tpu_custom_call.1} parent=1 // pred_fallthru
      _
    // Predicated region
    $region38: #{tpu_custom_call.1} parent=1 // pred_check
      _
    $region39: #{tpu_custom_call.1} parent=1 // pred_check_branch
      %764 = sbr.rel (0) target = $region41
    $region40: #{tpu_custom_call.1} parent=1 // pred_region
      %765 = dma.done [#allocation4], 256
    $region41: #{tpu_custom_call.1} parent=1 // pred_fallthru
      _
    %766 = vsyncpa [#allocation3], 1
    %767 = vsyncpa [#allocation6], 1
    %768 = vsyncpa [#allocation4], 1

</llo_original>
